<compile_context>
chip_gen: v5e
topology: v5e:2x2
jax: 0.10.0
libtpu: 0.0.40
codegen_flags: <defaults>
</compile_context>

<pallas_src>
import functools

import jax
import jax.numpy as jnp
from jax.experimental import pallas as pl
from jax.experimental.pallas import tpu as pltpu

LANE = 128  # TPU lane width


def _round_up(x: int, m: int) -> int:
    return (x + m - 1) // m * m


# ----------------------------------------------------------------------------
# Kernel
# ----------------------------------------------------------------------------
def _rotor_group_kernel(cmds_ref, thr_ref, consts_ref, out_ref, thr_new_ref):
    """One env-block of the rotor dynamics (kernel layout, fully packed tiles).

    cmds_ref, thr_ref, thr_new_ref : (S, BE)     S = fold * R sublanes, envs on lanes
    consts_ref                     : (4, S, 1)   [KF, KM*-dir, tau_up, tau_down]
    out_ref                        : (2, S, BE)  [thrusts, moments]
    """
    cmds = cmds_ref[...]
    thr = thr_ref[...]

    kf = consts_ref[0]        # (S, 1) -> lane-broadcast against (S, BE)
    km_nd = consts_ref[1]     # KM * (-directions), sign folded at init
    tau_up = consts_ref[2]    # already clipped to [0, 1] at init
    tau_down = consts_ref[3]

    # target_throttle = sqrt(clamp((cmds + 1) / 2, 0, 1))
    target = jnp.sqrt(jnp.clip((cmds + 1.0) * 0.5, 0.0, 1.0))

    # tau = clamp(where(target > throttle, tau_up, tau_down), 0, 1)
    # (clip applied to the operands at init; clip commutes with where)
    tau = jnp.where(target > thr, tau_up, tau_down)

    # throttle += tau * (target - throttle)
    thr_new = thr + tau * (target - thr)

    # noise term is exactly * 0.0 in the reference -> omitted
    t = jnp.clip(thr_new * thr_new, 0.0, 1.0)

    out_ref[0, :, :] = t * kf        # thrusts
    out_ref[1, :, :] = t * km_nd     # moments  (= t * KM * -directions)
    thr_new_ref[...] = thr_new


def _pallas_step(cmds_k, throttle_k, consts, block_envs):
    """Run the kernel over the (already kernel-layout, already padded) fleet."""
    S, ew = throttle_k.shape
    be = min(block_envs, ew)
    assert ew % be == 0, (ew, be)
    grid = (ew // be,)

    out_stacked, thr_new = pl.pallas_call(
        _rotor_group_kernel,
        grid=grid,
        in_specs=[
            pl.BlockSpec((S, be), lambda i: (0, i)),          # cmds
            pl.BlockSpec((S, be), lambda i: (0, i)),          # throttle (state)
            pl.BlockSpec(consts.shape, lambda i: (0, 0, 0)),  # folded constants
        ],
        out_specs=(
            pl.BlockSpec((2, S, be), lambda i: (0, 0, i)),    # [thrusts, moments]
            pl.BlockSpec((S, be), lambda i: (0, i)),          # new throttle
        ),
        out_shape=(
            jax.ShapeDtypeStruct((2, S, ew), jnp.float32),
            jax.ShapeDtypeStruct((S, ew), jnp.float32),
        ),
        # throttle input (idx 1) aliases new-throttle output (idx 1): in-place
        # state update inside the kernel (pair with jit buffer donation below).
        input_output_aliases={1: 1},
        compiler_params=pltpu.CompilerParams(
            dimension_semantics=("parallel",)),
    )(cmds_k, throttle_k, consts)
    return out_stacked, thr_new


# ----------------------------------------------------------------------------
# Layout helpers (env-major (E, R)  <->  kernel layout (fold*R, E_pad/fold))
# ----------------------------------------------------------------------------
def _to_kernel_layout(x, fold, e_pad):
    """x: (E, R) env-major -> (fold*R, e_pad // fold) kernel layout (zero pad)."""
    e, r = x.shape
    if e_pad != e:
        x = jnp.pad(x, ((0, e_pad - e), (0, 0)))
    ew = e_pad // fold
    return x.T.reshape(r, fold, ew).transpose(1, 0, 2).reshape(fold * r, ew)


def _from_kernel_layout(x_k, fold, num_rotors, num_envs):
    """x_k: (fold*R, ew) kernel layout -> (num_envs, R) env-major (sliced)."""
    s, ew = x_k.shape
    r = num_rotors
    e_pad = fold * ew
    x = x_k.reshape(fold, r, ew).transpose(1, 0, 2).reshape(r, e_pad).T
    return x[:num_envs]


# ----------------------------------------------------------------------------
# Jitted steps
# ----------------------------------------------------------------------------
@functools.partial(jax.jit, static_argnames=("block_envs",),
                   donate_argnames=("throttle_k",))
def rotor_group_step_kernel_layout(cmds_k, throttle_k, consts, *,
                                   block_envs=32 * 1024):
    """Fast path: everything stays in the lane-dense kernel layout.

    cmds_k, throttle_k : (S, Ew)   S = fold*R sublanes, env-lanes on the minor axis
    consts             : (4, S, 1)
    Returns (out_stacked (2, S, Ew) [thrusts, moments], new_throttle (S, Ew)).
    """
    return _pallas_step(cmds_k, throttle_k, consts, block_envs)


@functools.partial(jax.jit, static_argnames=("fold", "block_envs"),
                   donate_argnames=("throttle_k",))
def rotor_group_step_env_major(cmds, throttle_k, consts, *, fold,
                               block_envs=32 * 1024):
    """Convenience path: env-major (E, R) in/out, relayout fused into this jit."""
    e, r = cmds.shape
    s, ew = throttle_k.shape
    e_pad = fold * ew
    cmds_k = _to_kernel_layout(cmds, fold, e_pad)
    out_stacked, thr_new = _pallas_step(cmds_k, throttle_k, consts, block_envs)
    thrusts = _from_kernel_layout(out_stacked[0], fold, r, e)
    moments = _from_kernel_layout(out_stacked[1], fold, r, e)
    return thrusts, moments, thr_new


# ----------------------------------------------------------------------------
# Module wrapper
# ----------------------------------------------------------------------------
class RotorGroupJAX:
    """Functional JAX/Pallas port of the PyTorch RotorGroup module.

    The throttle state is kept persistently in kernel layout (fold*R, Ew)
    (padded once at construction) so the env batch sits on the lane axis and
    R=4 rotors x fold=2 env-halves fill all 8 sublanes of every f32 tile.
    `forward()` accepts/returns env-major arrays (or plain (num_rotors,)
    vectors for num_envs=1, matching the original module);
    `forward_kernel_layout()` is the zero-relayout fast path for simulators
    that keep the whole state lane-dense.
    """

    def __init__(self, rotor_config, dt: float, num_envs: int = 1,
                 block_envs: int = 32 * 1024):
        force_constants = jnp.asarray(rotor_config["force_constants"], jnp.float32)
        moment_constants = jnp.asarray(rotor_config["moment_constants"], jnp.float32)
        max_rot_vels = jnp.asarray(rotor_config["max_rotation_velocities"], jnp.float32)
        self.num_rotors = int(force_constants.shape[0])
        self.num_envs = int(num_envs)
        self.dt = dt
        self.time_up = 0.15
        self.time_down = 0.15
        self.noise_scale = 0.002

        R = self.num_rotors
        self.KF = jnp.square(max_rot_vels) * force_constants                    # (R,)
        self.KM = jnp.square(max_rot_vels) * moment_constants                   # (R,)
        self.directions = jnp.asarray(rotor_config["directions"], jnp.float32)  # (R,)
        self.tau_up = 0.43 * jnp.ones((R,), jnp.float32)
        self.tau_down = 0.43 * jnp.ones((R,), jnp.float32)

        # Sublane packing: fold `fold` env-halves onto the sublane axis so the
        # state has fold*R (= 8 for R=4) sublanes -> fully-used (8,128) tiles.
        self.fold = (8 // R) if (R < 8 and 8 % R == 0) else 1
        self.S = self.fold * R

        assert block_envs % LANE == 0
        self.block_envs = int(block_envs)
        ew = _round_up(-(-self.num_envs // self.fold), LANE)  # ceil-div then pad
        if ew > self.block_envs:
            ew = _round_up(ew, self.block_envs)               # exact grid blocks
        self.ew = ew
        self.e_pad = self.fold * ew

        # Fold constants once: a single stacked parameter array -> one DMA.
        # Row s of the kernel layout corresponds to rotor s % R.
        self.consts = jnp.stack([
            jnp.tile(self.KF, self.fold),
            jnp.tile(self.KM * (-self.directions), self.fold),
            jnp.tile(jnp.clip(self.tau_up, 0.0, 1.0), self.fold),
            jnp.tile(jnp.clip(self.tau_down, 0.0, 1.0), self.fold),
        ]).reshape(4, self.S, 1)

        # Throttle state in kernel layout, padded ONCE, carried functionally
        # (and updated in place via donation + input_output_aliases).
        self.throttle_k = jnp.zeros((self.S, self.ew), jnp.float32)

    # -- env-major convenience API (matches the original module) -------------
    def forward(self, cmds):
        """cmds: (num_rotors,) or (num_envs, num_rotors) in [-1, 1]."""
        cmds = jnp.asarray(cmds, jnp.float32)
        squeeze = cmds.ndim == 1
        if squeeze:
            cmds = cmds[None, :]
        thrusts, moments, self.throttle_k = rotor_group_step_env_major(
            cmds, self.throttle_k, self.consts,
            fold=self.fold, block_envs=self.block_envs)
        if squeeze:
            thrusts, moments = thrusts[0], moments[0]
        return thrusts, moments

    # -- lane-dense fast path (no relayout, no pad, no slice) -----------------
    def forward_kernel_layout(self, cmds_k):
        """cmds_k: (S, Ew) kernel-layout commands. Returns (2, S, Ew) stacked
        [thrusts, moments]; throttle state updated in place."""
        out_stacked, self.throttle_k = rotor_group_step_kernel_layout(
            cmds_k, self.throttle_k, self.consts, block_envs=self.block_envs)
        return out_stacked

    # -- layout utilities ------------------------------------------------------
    def to_kernel_layout(self, x):
        return _to_kernel_layout(jnp.asarray(x, jnp.float32), self.fold, self.e_pad)

    def from_kernel_layout(self, x_k):
        return _from_kernel_layout(x_k, self.fold, self.num_rotors, self.num_envs)

    def throttle_env_major(self):
        return self.from_kernel_layout(self.throttle_k)


# ----------------------------------------------------------------------------
# Pure-JAX reference (mirrors the PyTorch forward, env-major layout)
# ----------------------------------------------------------------------------
def _reference_forward(cmds, throttle, kf, km, directions, tau_up, tau_down):
    target = jnp.sqrt(jnp.clip((cmds + 1.0) / 2.0, 0.0, 1.0))
    tau = jnp.clip(jnp.where(target > throttle, tau_up, tau_down), 0.0, 1.0)
    thr_new = throttle + tau * (target - throttle)
    t = jnp.clip(jnp.square(thr_new), 0.0, 1.0)
    return t * kf, t * km * (-directions), thr_new


if __name__ == "__main__":
    rotor_config = {
        "force_constants": [2.35e-08, 2.35e-08, 2.35e-08, 2.35e-08],
        "moment_constants": [7.24e-10, 7.24e-10, 7.24e-10, 7.24e-10],
        "max_rotation_velocities": [2100.0, 2100.0, 2100.0, 2100.0],
        "directions": [1.0, -1.0, 1.0, -1.0],
    }

    key = jax.random.PRNGKey(0)
    k1, k2, k3 = jax.random.split(key, 3)

    # --- batched fleet (num_envs NOT a multiple of 128 -> exercises padding) --
    num_envs = 96
    rg = RotorGroupJAX(rotor_config, dt=0.016, num_envs=num_envs)
    cmds1 = jax.random.uniform(k1, (num_envs, rg.num_rotors), jnp.float32, -1.0, 1.0)
    cmds2 = jax.random.uniform(k2, (num_envs, rg.num_rotors), jnp.float32, -1.0, 1.0)

    # Pure-JAX reference over two sequential steps (checks the throttle carry).
    thr_ref = jnp.zeros((num_envs, rg.num_rotors), jnp.float32)
    ref_t1, ref_m1, thr_ref = _reference_forward(
        cmds1, thr_ref, rg.KF, rg.KM, rg.directions, rg.tau_up, rg.tau_down)
    ref_t2, ref_m2, thr_ref = _reference_forward(
        cmds2, thr_ref, rg.KF, rg.KM, rg.directions, rg.tau_up, rg.tau_down)

    t1, m1 = rg.forward(cmds1)
    t2, m2 = rg.forward(cmds2)
    jax.block_until_ready((t1, m1, t2, m2, rg.throttle_k))

    assert jnp.allclose(t1, ref_t1, atol=1e-6, rtol=1e-6)
    assert jnp.allclose(m1, ref_m1, atol=1e-6, rtol=1e-6)
    assert jnp.allclose(t2, ref_t2, atol=1e-6, rtol=1e-6)
    assert jnp.allclose(m2, ref_m2, atol=1e-6, rtol=1e-6)
    assert jnp.allclose(rg.throttle_env_major(), thr_ref, atol=1e-6, rtol=1e-6)

    # --- lane-dense fast path (no wrapper relayout inside the step) -----------
    rg_fast = RotorGroupJAX(rotor_config, dt=0.016, num_envs=num_envs)
    cmds1_k = rg_fast.to_kernel_layout(cmds1)
    out_k = rg_fast.forward_kernel_layout(cmds1_k)
    jax.block_until_ready(out_k)
    t1f = rg_fast.from_kernel_layout(out_k[0])
    m1f = rg_fast.from_kernel_layout(out_k[1])
    assert jnp.allclose(t1f, ref_t1, atol=1e-6, rtol=1e-6)
    assert jnp.allclose(m1f, ref_m1, atol=1e-6, rtol=1e-6)

    # --- single-env path: identical semantics to the original PyTorch module --
    rg1 = RotorGroupJAX(rotor_config, dt=0.016, num_envs=1)
    cmds_single = jax.random.uniform(k3, (rg1.num_rotors,), jnp.float32, -1.0, 1.0)
    ref_ts, ref_ms, ref_thr_s = _reference_forward(
        cmds_single[None, :], jnp.zeros((1, rg1.num_rotors), jnp.float32),
        rg1.KF, rg1.KM, rg1.directions, rg1.tau_up, rg1.tau_down)
    ts, ms = rg1.forward(cmds_single)
    jax.block_until_ready((ts, ms, rg1.throttle_k))
    assert jnp.allclose(ts, ref_ts[0], atol=1e-6, rtol=1e-6)
    assert jnp.allclose(ms, ref_ms[0], atol=1e-6, rtol=1e-6)
    assert jnp.allclose(rg1.throttle_env_major(), ref_thr_s, atol=1e-6, rtol=1e-6)

    # TODO(synk): for a real simulator, fuse this kernel into the surrounding
    # dynamics step so thrusts/moments never round-trip through HBM.
    print("KERNEL_OK")
</pallas_src>

<mosaic_0001>
module attributes {stable_mosaic.version = 11 : i64} {
  func.func @_rotor_group_kernel(%arg0: i32, %arg1: memref<8x128xf32, #tpu.memory_space<vmem>>, %arg2: memref<8x128xf32, #tpu.memory_space<vmem>>, %arg3: memref<4x8x1xf32, #tpu.memory_space<vmem>>, %arg4: memref<2x8x128xf32, #tpu.memory_space<vmem>>, %arg5: memref<8x128xf32, #tpu.memory_space<vmem>>) attributes {dimension_semantics = [#tpu.dimension_semantics<parallel>], iteration_bounds = array<i64: 1>, scalar_prefetch = 0 : i64, scratch_operands = 0 : i64, tpu.core_type = #tpu.core_type<tc>, window_params = [{transform_indices = @transform_0, window_bounds = array<i64: 8, 128>}, {transform_indices = @transform_1, window_bounds = array<i64: 8, 128>}, {pipeline_mode = #tpu.pipeline_mode<synchronous>, transform_indices = @transform_2, window_bounds = array<i64: 4, 8, 1>}, {transform_indices = @transform_3, window_bounds = array<i64: 2, 8, 128>}, {transform_indices = @transform_4, window_bounds = array<i64: 8, 128>}]} {
    %c0 = arith.constant 0 : index
    %c0_0 = arith.constant 0 : index
    %0 = vector.load %arg1[%c0, %c0_0] : memref<8x128xf32, #tpu.memory_space<vmem>>, vector<8x128xf32>
    %c0_1 = arith.constant 0 : index
    %c0_2 = arith.constant 0 : index
    %1 = vector.load %arg2[%c0_1, %c0_2] : memref<8x128xf32, #tpu.memory_space<vmem>>, vector<8x128xf32>
    %c0_3 = arith.constant 0 : index
    %c0_4 = arith.constant 0 : index
    %c0_5 = arith.constant 0 : index
    %2 = vector.load %arg3[%c0_3, %c0_4, %c0_5] : memref<4x8x1xf32, #tpu.memory_space<vmem>>, vector<1x8x1xf32>
    %3 = vector.shape_cast %2 : vector<1x8x1xf32> to vector<8x1xf32>
    %c1 = arith.constant 1 : index
    %c0_6 = arith.constant 0 : index
    %c0_7 = arith.constant 0 : index
    %4 = vector.load %arg3[%c1, %c0_6, %c0_7] : memref<4x8x1xf32, #tpu.memory_space<vmem>>, vector<1x8x1xf32>
    %5 = vector.shape_cast %4 : vector<1x8x1xf32> to vector<8x1xf32>
    %c2 = arith.constant 2 : index
    %c0_8 = arith.constant 0 : index
    %c0_9 = arith.constant 0 : index
    %6 = vector.load %arg3[%c2, %c0_8, %c0_9] : memref<4x8x1xf32, #tpu.memory_space<vmem>>, vector<1x8x1xf32>
    %7 = vector.shape_cast %6 : vector<1x8x1xf32> to vector<8x1xf32>
    %c3 = arith.constant 3 : index
    %c0_10 = arith.constant 0 : index
    %c0_11 = arith.constant 0 : index
    %8 = vector.load %arg3[%c3, %c0_10, %c0_11] : memref<4x8x1xf32, #tpu.memory_space<vmem>>, vector<1x8x1xf32>
    %9 = vector.shape_cast %8 : vector<1x8x1xf32> to vector<8x1xf32>
    %cst = arith.constant 1.000000e+00 : f32
    %10 = vector.broadcast %cst : f32 to vector<8x128xf32>
    %11 = arith.addf %0, %10 : vector<8x128xf32>
    %cst_12 = arith.constant 5.000000e-01 : f32
    %12 = vector.broadcast %cst_12 : f32 to vector<8x128xf32>
    %13 = arith.mulf %11, %12 : vector<8x128xf32>
    %cst_13 = arith.constant 0.000000e+00 : f32
    %cst_14 = arith.constant 1.000000e+00 : f32
    %14 = vector.broadcast %cst_13 : f32 to vector<8x128xf32>
    %15 = arith.maximumf %14, %13 : vector<8x128xf32>
    %16 = vector.broadcast %cst_14 : f32 to vector<8x128xf32>
    %17 = arith.minimumf %16, %15 : vector<8x128xf32>
    %18 = math.sqrt %17 : vector<8x128xf32>
    %19 = arith.cmpf ogt, %18, %1 : vector<8x128xf32>
    %20 = vector.shape_cast %7 : vector<8x1xf32> to vector<8x1xf32>
    %21 = vector.broadcast %20 : vector<8x1xf32> to vector<8x128xf32>
    %22 = vector.shape_cast %9 : vector<8x1xf32> to vector<8x1xf32>
    %23 = vector.broadcast %22 : vector<8x1xf32> to vector<8x128xf32>
    %24 = arith.select %19, %21, %23 : vector<8x128xi1>, vector<8x128xf32>
    %25 = arith.subf %18, %1 : vector<8x128xf32>
    %26 = arith.mulf %24, %25 : vector<8x128xf32>
    %27 = arith.addf %1, %26 : vector<8x128xf32>
    %28 = arith.mulf %27, %27 : vector<8x128xf32>
    %cst_15 = arith.constant 0.000000e+00 : f32
    %cst_16 = arith.constant 1.000000e+00 : f32
    %29 = vector.broadcast %cst_15 : f32 to vector<8x128xf32>
    %30 = arith.maximumf %29, %28 : vector<8x128xf32>
    %31 = vector.broadcast %cst_16 : f32 to vector<8x128xf32>
    %32 = arith.minimumf %31, %30 : vector<8x128xf32>
    %33 = vector.broadcast %3 : vector<8x1xf32> to vector<8x128xf32>
    %34 = arith.mulf %32, %33 : vector<8x128xf32>
    %c0_17 = arith.constant 0 : index
    %c0_18 = arith.constant 0 : index
    %c0_19 = arith.constant 0 : index
    %35 = vector.load %arg4[%c0_17, %c0_18, %c0_19] : memref<2x8x128xf32, #tpu.memory_space<vmem>>, vector<1x8x128xf32>
    %36 = vector.shape_cast %35 : vector<1x8x128xf32> to vector<8x128xf32>
    %37 = vector.shape_cast %34 : vector<8x128xf32> to vector<1x8x128xf32>
    tpu.vector_store %arg4[%c0_17, %c0_18, %c0_19], %37 {strides = array<i32>} : memref<2x8x128xf32, #tpu.memory_space<vmem>>, vector<1x8x128xf32>,
    %38 = vector.broadcast %5 : vector<8x1xf32> to vector<8x128xf32>
    %39 = arith.mulf %32, %38 : vector<8x128xf32>
    %c1_20 = arith.constant 1 : index
    %c0_21 = arith.constant 0 : index
    %c0_22 = arith.constant 0 : index
    %40 = vector.load %arg4[%c1_20, %c0_21, %c0_22] : memref<2x8x128xf32, #tpu.memory_space<vmem>>, vector<1x8x128xf32>
    %41 = vector.shape_cast %40 : vector<1x8x128xf32> to vector<8x128xf32>
    %42 = vector.shape_cast %39 : vector<8x128xf32> to vector<1x8x128xf32>
    tpu.vector_store %arg4[%c1_20, %c0_21, %c0_22], %42 {strides = array<i32>} : memref<2x8x128xf32, #tpu.memory_space<vmem>>, vector<1x8x128xf32>,
    %c0_23 = arith.constant 0 : index
    %c0_24 = arith.constant 0 : index
    %43 = vector.load %arg5[%c0_23, %c0_24] : memref<8x128xf32, #tpu.memory_space<vmem>>, vector<8x128xf32>
    tpu.vector_store %arg5[%c0_23, %c0_24], %27 {strides = array<i32>} : memref<8x128xf32, #tpu.memory_space<vmem>>, vector<8x128xf32>,
    return
  }
  func.func @transform_0(%arg0: i32) -> (i32, i32) {
    %c0_i32 = arith.constant 0 : i32
    %c0_i32_0 = arith.constant 0 : i32
    return %c0_i32, %arg0 : i32, i32
  }
  func.func @transform_1(%arg0: i32) -> (i32, i32) {
    %c0_i32 = arith.constant 0 : i32
    %c0_i32_0 = arith.constant 0 : i32
    return %c0_i32, %arg0 : i32, i32
  }
  func.func @transform_2(%arg0: i32) -> (i32, i32, i32) {
    %c0_i32 = arith.constant 0 : i32
    %c0_i32_0 = arith.constant 0 : i32
    %c0_i32_1 = arith.constant 0 : i32
    %c0_i32_2 = arith.constant 0 : i32
    return %c0_i32, %c0_i32_0, %c0_i32_1 : i32, i32, i32
  }
  func.func @transform_3(%arg0: i32) -> (i32, i32, i32) {
    %c0_i32 = arith.constant 0 : i32
    %c0_i32_0 = arith.constant 0 : i32
    %c0_i32_1 = arith.constant 0 : i32
    return %c0_i32, %c0_i32_0, %arg0 : i32, i32, i32
  }
  func.func @transform_4(%arg0: i32) -> (i32, i32) {
    %c0_i32 = arith.constant 0 : i32
    %c0_i32_0 = arith.constant 0 : i32
    return %c0_i32, %arg0 : i32, i32
  }
}

</mosaic_0001>

<llo_original>
// kernel: rotor_group_step_env_major.1
$region0: #{rotor_group_step_env_major.1}
  #allocation0 [shape = 'u32[]', space=smem, size = 0x4, offset = 0x4, fixed_abs, tag = 'smem constant byte address 0x4 - core index']
  #allocation1 [shape = 'u32[72,128]{1,0:T(1,128)}', space=vmem, size = 0x9000, scoped, tag = 'internal scratch']
  %s0 = inlined_call_operand.vmem [shape: f32[8,128], index: 0, kind: input, shape index: {}]
  %s1 = inlined_call_operand.vmem [shape: f32[8,128], index: 1, kind: input, shape index: {}, may-alias: {1,4}]
  %s2 = inlined_call_operand.vmem [shape: f32[4,8,1], index: 2, kind: input, shape index: {}]
  %s3 = inlined_call_operand.vmem [shape: f32[2,8,128], index: 3, kind: output, shape index: {0}]
  %s4 = inlined_call_operand.vmem [shape: f32[8,128], index: 4, kind: output, shape index: {1}, may-alias: {1,4}]
  %5 = xla_tuple %s3, %s4
  %s6 = sld [smem:[#allocation0]]
  $region30: #{rotor_group_step_env_major.1} parent=0
    _
  %s8 = ssub.s32 1, %s6
  %s9 = scalar_select 0, %s8, %s6
  // Predicated region
  $region2: #{rotor_group_step_env_major.1} parent=0 // pred_check
    _
  $region3: #{rotor_group_step_env_major.1} parent=0 // pred_check_branch
    %11 = sbr.rel (0) target = $region5
  $region4: #{rotor_group_step_env_major.1} parent=0 // pred_region
    _
  $region5: #{rotor_group_step_env_major.1} parent=0 // pred_fallthru
    _
  // Predicated region
  $region6: #{rotor_group_step_env_major.1} parent=0 // pred_check
    _
  $region7: #{rotor_group_step_env_major.1} parent=0 // pred_check_branch
    %13 = sbr.rel (0) target = $region9
  $region8: #{rotor_group_step_env_major.1} parent=0 // pred_region
    _
  $region9: #{rotor_group_step_env_major.1} parent=0 // pred_fallthru
    _
  // Predicated region
  $region10: #{rotor_group_step_env_major.1} parent=0 // pred_check
    _
  $region11: #{rotor_group_step_env_major.1} parent=0 // pred_check_branch
    %15 = sbr.rel (0) target = $region13
  $region12: #{rotor_group_step_env_major.1} parent=0 // pred_region
    _
  $region13: #{rotor_group_step_env_major.1} parent=0 // pred_fallthru
    _
  %v16 = vld [vmem:[%s0] sm:$0xff]
  %v17 = vld [vmem:[%s1] sm:$0xff]
  %v18 = vld [vmem:[%s2] sm:$0xff]
  %s19 = scalar_lea.vmem %s2, 8
  %v20 = vld [vmem:[%s19] sm:$0xff]
  %s21 = scalar_lea.vmem %s2, 16
  %v22 = vld [vmem:[%s21] sm:$0xff]
  %s23 = scalar_lea.vmem %s2, 24
  %v24 = vld [vmem:[%s23] sm:$0xff]
  %v25 = vadd.f32 %v16, 1.0
  %v26 = vmul.f32 %v25, 0.5
  %v27 = vmax.f32 %v26, 0.0
  %v28 = vmin.f32 %v27, 1.0
  %v29 = vrsqrt.pop %v28
  %v30 = vmul.f32 %v29, %v28
  %v31 = vmul.f32 %v30, %v29
  %v32 = vmul.f32 0.5, %v31
  %v33 = vsub.f32 1.5, %v32
  %v34 = vmul.f32 %v29, %v33
  %v35 = vmul.f32 %v28, %v34
  %vm36 = vcmp.eq.f32.partialorder %v28, inf
  %v37 = vsel %vm36, %v28, %v35
  %vm38 = vcmp.eq.f32.partialorder %v28, 0.0
  %v39 = vand.u32 %v28, 2147483648
  %v40 = vsel %vm38, %v39, %v37
  %vm41 = vcmp.gt.f32.partialorder %v40, %v17
  %43 = vset.pattern.permute.xlu0 0
  %44 = vperm.xlu0 %43, %v22
  %v45 = vpop.permute.xlu0 %44
  %48 = vset.pattern.permute.xlu0 0
  %49 = vperm.xlu0 %48, %v24
  %v50 = vpop.permute.xlu0 %49
  %v52 = vsel %vm41, %v45, %v50
  %v53 = vsub.f32 %v40, %v17
  %v54 = vmul.f32 %v52, %v53
  %v55 = vadd.f32 %v17, %v54
  %v56 = vmul.f32 %v55, %v55
  %v57 = vmax.f32 %v56, 0.0
  %v58 = vmin.f32 %v57, 1.0
  %60 = vset.pattern.permute.xlu0 0
  %61 = vperm.xlu0 %60, %v18
  %v62 = vpop.permute.xlu0 %61
  %v64 = vmul.f32 %v58, %v62
  %65 = vst [vmem:[%s3] sm:$0xff] %v64
  %67 = vset.pattern.permute.xlu0 0
  %68 = vperm.xlu0 %67, %v20
  %v69 = vpop.permute.xlu0 %68
  %v71 = vmul.f32 %v58, %v69
  %s72 = scalar_lea.vmem %s3, 8
  %73 = vst [vmem:[%s72] sm:$0xff] %v71
  %74 = vst [vmem:[%s4] sm:$0xff] %v55
  // Predicated region
  $region14: #{rotor_group_step_env_major.1} parent=0 // pred_check
    _
  $region15: #{rotor_group_step_env_major.1} parent=0 // pred_check_branch
    %76 = sbr.rel (0) target = $region17
  $region16: #{rotor_group_step_env_major.1} parent=0 // pred_region
    _
  $region17: #{rotor_group_step_env_major.1} parent=0 // pred_fallthru
    _
  // Predicated region
  $region18: #{rotor_group_step_env_major.1} parent=0 // pred_check
    _
  $region19: #{rotor_group_step_env_major.1} parent=0 // pred_check_branch
    %78 = sbr.rel (0) target = $region21
  $region20: #{rotor_group_step_env_major.1} parent=0 // pred_region
    _
  $region21: #{rotor_group_step_env_major.1} parent=0 // pred_fallthru
    _
  // Predicated region
  $region22: #{rotor_group_step_env_major.1} parent=0 // pred_check
    _
  $region23: #{rotor_group_step_env_major.1} parent=0 // pred_check_branch
    %80 = sbr.rel (0) target = $region25
  $region24: #{rotor_group_step_env_major.1} parent=0 // pred_region
    _
  $region25: #{rotor_group_step_env_major.1} parent=0 // pred_fallthru
    _
  // Predicated region
  $region26: #{rotor_group_step_env_major.1} parent=0 // pred_check
    _
  $region27: #{rotor_group_step_env_major.1} parent=0 // pred_check_branch
    %82 = sbr.rel (0) target = $region29
  $region28: #{rotor_group_step_env_major.1} parent=0 // pred_region
    _
  $region29: #{rotor_group_step_env_major.1} parent=0 // pred_fallthru
    _

</llo_original>
